<compile_context>
chip_gen: v7x
topology: tpu7x:2x2x1
jax: 0.10.0
libtpu: 0.0.40
codegen_flags: <defaults>
</compile_context>

<pallas_src>
import functools

import jax
import jax.numpy as jnp
from jax.experimental import pallas as pl
from jax.experimental.pallas import tpu as pltpu


def _round_up(x, m):
    return ((x + m - 1) // m) * m


def bbox_head_kernel(x_ref, w1_ref, b1_ref, w2_ref, b2_ref,
                     wo_ref, bo_ref, out_ref):
    """One batch-tile of the full BBoxHead forward pass (all in VMEM).

    Output heads are fused: out = fc2 @ [Wc | Wr | 0-pad] + [bc | br | 0-pad],
    giving a single lane-dense (tile_b, OUT_PAD) store.
    """
    x = x_ref[...]

    # fc1 = relu(x @ W1 + b1)
    fc1 = jnp.dot(x, w1_ref[...], preferred_element_type=jnp.float32) + b1_ref[...]
    fc1 = jnp.maximum(fc1, 0.0)

    # fc2 = relu(fc1 @ W2 + b2)
    fc2 = jnp.dot(fc1, w2_ref[...], preferred_element_type=jnp.float32) + b2_ref[...]
    fc2 = jnp.maximum(fc2, 0.0)

    # fused heads: [cls | reg | pad]
    out_ref[...] = (jnp.dot(fc2, wo_ref[...], preferred_element_type=jnp.float32)
                    + bo_ref[...]).astype(out_ref.dtype)


@functools.partial(jax.jit, static_argnames=("tile_b",))
def bbox_head_forward(x, params, tile_b=512):
    """x: (B, num_channels). Returns (cls_pred (B, num_classes), bbox_pred (B, 7))."""
    w1, b1, w2, b2, wc, bc, wr, br = params
    B, C = x.shape
    F = w1.shape[1]
    NC = wc.shape[1]
    NR = wr.shape[1]              # 7
    OUT = NC + NR
    OUT_PAD = _round_up(OUT, 128)  # lane-dense output slab

    # ---- fuse the two output heads into one lane-dense weight / bias --------
    wo = jnp.concatenate([wc, wr], axis=1)
    wo = jnp.pad(wo, ((0, 0), (0, OUT_PAD - OUT)))
    bo = jnp.concatenate([bc, br], axis=1)
    bo = jnp.pad(bo, ((0, 0), (0, OUT_PAD - OUT)))

    # ---- batch tiling: big tiles, cdiv grid, zero-padded tail ---------------
    tile_b_eff = min(int(tile_b), _round_up(B, 8))
    tile_b_eff = _round_up(tile_b_eff, 8)
    B_pad = _round_up(B, tile_b_eff)
    if B_pad != B:
        x = jnp.pad(x, ((0, B_pad - B), (0, 0)))
    grid = (pl.cdiv(B_pad, tile_b_eff),)

    # ---- explicit VMEM budget (double-buffered x + out streams + weights) ---
    bpe = 4  # f32
    est_bytes = bpe * (
        2 * tile_b_eff * C            # x tiles (double-buffered)
        + 2 * tile_b_eff * OUT_PAD    # fused output tiles (double-buffered)
        + C * F + F * F + F * OUT_PAD # resident weights
        + 2 * F + OUT_PAD             # biases
        + 2 * tile_b_eff * F          # intermediate activations headroom
    )
    # Cap comfortably under v7x's 64 MiB physical VMEM per TC.
    vmem_limit = int(min(48 * 2**20, max(8 * 2**20, 2 * est_bytes)))

    # Weights/biases are replicated to every grid step (constant block index
    # -> fetched once, stay resident in VMEM).
    def rep(shape):
        return pl.BlockSpec(shape, lambda i: (0, 0))

    fused = pl.pallas_call(
        bbox_head_kernel,
        out_shape=jax.ShapeDtypeStruct((B_pad, OUT_PAD), jnp.float32),
        grid_spec=pltpu.PrefetchScalarGridSpec(
            num_scalar_prefetch=0,
            grid=grid,
            in_specs=[
                pl.BlockSpec((tile_b_eff, C), lambda i: (i, 0)),  # x tile
                rep((C, F)), rep((1, F)),                         # fc1
                rep((F, F)), rep((1, F)),                         # fc2
                rep((F, OUT_PAD)), rep((1, OUT_PAD)),             # fused heads
            ],
            out_specs=pl.BlockSpec((tile_b_eff, OUT_PAD), lambda i: (i, 0)),
        ),
        compiler_params=pltpu.CompilerParams(
            dimension_semantics=("parallel",),
            vmem_limit_bytes=vmem_limit),
    )(x, w1, b1, w2, b2, wo, bo)

    cls_pred = fused[:B, :NC]
    bbox_pred = fused[:B, NC:NC + NR]
    return cls_pred, bbox_pred


def init_bbox_head_params(key, num_classes, num_channels, num_feat):
    """Deterministic Kaiming-normal weights (fan_in, relu gain), zero biases.

    Weights are stored pre-transposed as (in, out); biases as (1, out) rows
    so they broadcast cleanly inside the kernel.
    """
    ks = jax.random.split(key, 4)

    def kaiming(k, fan_in, fan_out):
        std = jnp.sqrt(2.0 / fan_in)
        return jax.random.normal(k, (fan_in, fan_out), dtype=jnp.float32) * std

    w1 = kaiming(ks[0], num_channels, num_feat)
    b1 = jnp.zeros((1, num_feat), jnp.float32)
    w2 = kaiming(ks[1], num_feat, num_feat)
    b2 = jnp.zeros((1, num_feat), jnp.float32)
    wc = kaiming(ks[2], num_feat, num_classes)
    bc = jnp.zeros((1, num_classes), jnp.float32)
    wr = kaiming(ks[3], num_feat, 7)
    br = jnp.zeros((1, 7), jnp.float32)
    return (w1, b1, w2, b2, wc, bc, wr, br)


def bbox_head_reference(x, params):
    """Pure-JAX reference matching the PyTorch forward."""
    w1, b1, w2, b2, wc, bc, wr, br = params
    fc1 = jax.nn.relu(x @ w1 + b1)
    fc2 = jax.nn.relu(fc1 @ w2 + b2)
    return fc2 @ wc + bc, fc2 @ wr + br


if __name__ == "__main__":
    num_classes = 4
    num_channels = 32
    num_feat = 32
    batch = 16   # NOT a multiple of the default tile -> exercises pad/slice path

    key = jax.random.PRNGKey(0)
    k_param, k_x = jax.random.split(key)

    params = init_bbox_head_params(k_param, num_classes, num_channels, num_feat)
    # x corresponds to the already-flattened input: (batch, num_channels)
    x = jax.random.normal(k_x, (batch, num_channels), dtype=jnp.float32)

    cls_pred, bbox_pred = bbox_head_forward(x, params)
    jax.block_until_ready((cls_pred, bbox_pred))

    # correctness check against pure-JAX reference
    cls_ref, reg_ref = bbox_head_reference(x, params)
    assert cls_pred.shape == (batch, num_classes)
    assert bbox_pred.shape == (batch, 7)
    assert jnp.allclose(cls_pred, cls_ref, atol=1e-5, rtol=1e-5)
    assert jnp.allclose(bbox_pred, reg_ref, atol=1e-5, rtol=1e-5)

    print("KERNEL_OK")
</pallas_src>

<mosaic_0001>
module attributes {stable_mosaic.version = 11 : i64} {
  func.func @bbox_head_kernel(%arg0: i32, %arg1: memref<16x32xf32, #tpu.memory_space<vmem>>, %arg2: memref<32x32xf32, #tpu.memory_space<vmem>>, %arg3: memref<1x32xf32, #tpu.memory_space<vmem>>, %arg4: memref<32x32xf32, #tpu.memory_space<vmem>>, %arg5: memref<1x32xf32, #tpu.memory_space<vmem>>, %arg6: memref<32x128xf32, #tpu.memory_space<vmem>>, %arg7: memref<1x128xf32, #tpu.memory_space<vmem>>, %arg8: memref<16x128xf32, #tpu.memory_space<vmem>>) attributes {dimension_semantics = [#tpu.dimension_semantics<parallel>], iteration_bounds = array<i64: 1>, scalar_prefetch = 0 : i64, scratch_operands = 0 : i64, tpu.core_type = #tpu.core_type<tc>, window_params = [{transform_indices = @transform_0, window_bounds = array<i64: 16, 32>}, {pipeline_mode = #tpu.pipeline_mode<synchronous>, transform_indices = @transform_1, window_bounds = array<i64: 32, 32>}, {pipeline_mode = #tpu.pipeline_mode<synchronous>, transform_indices = @transform_2, window_bounds = array<i64: 1, 32>}, {pipeline_mode = #tpu.pipeline_mode<synchronous>, transform_indices = @transform_3, window_bounds = array<i64: 32, 32>}, {pipeline_mode = #tpu.pipeline_mode<synchronous>, transform_indices = @transform_4, window_bounds = array<i64: 1, 32>}, {pipeline_mode = #tpu.pipeline_mode<synchronous>, transform_indices = @transform_5, window_bounds = array<i64: 32, 128>}, {pipeline_mode = #tpu.pipeline_mode<synchronous>, transform_indices = @transform_6, window_bounds = array<i64: 1, 128>}, {transform_indices = @transform_7, window_bounds = array<i64: 16, 128>}]} {
    %c0 = arith.constant 0 : index
    %c0_0 = arith.constant 0 : index
    %0 = vector.load %arg1[%c0, %c0_0] : memref<16x32xf32, #tpu.memory_space<vmem>>, vector<16x32xf32>
    %c0_1 = arith.constant 0 : index
    %c0_2 = arith.constant 0 : index
    %1 = vector.load %arg2[%c0_1, %c0_2] : memref<32x32xf32, #tpu.memory_space<vmem>>, vector<32x32xf32>
    %cst = arith.constant dense<0.000000e+00> : vector<16x32xf32>
    %2 = tpu.matmul %0, %1, %cst {dimension_numbers = #tpu.dot_dimension_numbers<[1], [0], [0], [1], [0, 0, 1, 1], [], []>} : vector<16x32xf32>, vector<32x32xf32>, vector<16x32xf32> -> vector<16x32xf32>
    %c0_3 = arith.constant 0 : index
    %c0_4 = arith.constant 0 : index
    %3 = vector.load %arg3[%c0_3, %c0_4] : memref<1x32xf32, #tpu.memory_space<vmem>>, vector<1x32xf32>
    %4 = vector.broadcast %3 : vector<1x32xf32> to vector<16x32xf32>
    %5 = arith.addf %2, %4 : vector<16x32xf32>
    %cst_5 = arith.constant 0.000000e+00 : f32
    %6 = vector.broadcast %cst_5 : f32 to vector<16x32xf32>
    %7 = arith.maximumf %5, %6 : vector<16x32xf32>
    %c0_6 = arith.constant 0 : index
    %c0_7 = arith.constant 0 : index
    %8 = vector.load %arg4[%c0_6, %c0_7] : memref<32x32xf32, #tpu.memory_space<vmem>>, vector<32x32xf32>
    %cst_8 = arith.constant dense<0.000000e+00> : vector<16x32xf32>
    %9 = tpu.matmul %7, %8, %cst_8 {dimension_numbers = #tpu.dot_dimension_numbers<[1], [0], [0], [1], [0, 0, 1, 1], [], []>} : vector<16x32xf32>, vector<32x32xf32>, vector<16x32xf32> -> vector<16x32xf32>
    %c0_9 = arith.constant 0 : index
    %c0_10 = arith.constant 0 : index
    %10 = vector.load %arg5[%c0_9, %c0_10] : memref<1x32xf32, #tpu.memory_space<vmem>>, vector<1x32xf32>
    %11 = vector.broadcast %10 : vector<1x32xf32> to vector<16x32xf32>
    %12 = arith.addf %9, %11 : vector<16x32xf32>
    %cst_11 = arith.constant 0.000000e+00 : f32
    %13 = vector.broadcast %cst_11 : f32 to vector<16x32xf32>
    %14 = arith.maximumf %12, %13 : vector<16x32xf32>
    %c0_12 = arith.constant 0 : index
    %c0_13 = arith.constant 0 : index
    %15 = vector.load %arg6[%c0_12, %c0_13] : memref<32x128xf32, #tpu.memory_space<vmem>>, vector<32x128xf32>
    %cst_14 = arith.constant dense<0.000000e+00> : vector<16x128xf32>
    %16 = tpu.matmul %14, %15, %cst_14 {dimension_numbers = #tpu.dot_dimension_numbers<[1], [0], [0], [1], [0, 0, 1, 1], [], []>} : vector<16x32xf32>, vector<32x128xf32>, vector<16x128xf32> -> vector<16x128xf32>
    %c0_15 = arith.constant 0 : index
    %c0_16 = arith.constant 0 : index
    %17 = vector.load %arg7[%c0_15, %c0_16] : memref<1x128xf32, #tpu.memory_space<vmem>>, vector<1x128xf32>
    %18 = vector.broadcast %17 : vector<1x128xf32> to vector<16x128xf32>
    %19 = arith.addf %16, %18 : vector<16x128xf32>
    %c0_17 = arith.constant 0 : index
    %c0_18 = arith.constant 0 : index
    %20 = vector.load %arg8[%c0_17, %c0_18] : memref<16x128xf32, #tpu.memory_space<vmem>>, vector<16x128xf32>
    tpu.vector_store %arg8[%c0_17, %c0_18], %19 {strides = array<i32>} : memref<16x128xf32, #tpu.memory_space<vmem>>, vector<16x128xf32>,
    return
  }
  func.func @transform_0(%arg0: i32) -> (i32, i32) {
    %c0_i32 = arith.constant 0 : i32
    %c0_i32_0 = arith.constant 0 : i32
    return %arg0, %c0_i32 : i32, i32
  }
  func.func @transform_1(%arg0: i32) -> (i32, i32) {
    %c0_i32 = arith.constant 0 : i32
    %c0_i32_0 = arith.constant 0 : i32
    %c0_i32_1 = arith.constant 0 : i32
    return %c0_i32, %c0_i32_0 : i32, i32
  }
  func.func @transform_2(%arg0: i32) -> (i32, i32) {
    %c0_i32 = arith.constant 0 : i32
    %c0_i32_0 = arith.constant 0 : i32
    %c0_i32_1 = arith.constant 0 : i32
    return %c0_i32, %c0_i32_0 : i32, i32
  }
  func.func @transform_3(%arg0: i32) -> (i32, i32) {
    %c0_i32 = arith.constant 0 : i32
    %c0_i32_0 = arith.constant 0 : i32
    %c0_i32_1 = arith.constant 0 : i32
    return %c0_i32, %c0_i32_0 : i32, i32
  }
  func.func @transform_4(%arg0: i32) -> (i32, i32) {
    %c0_i32 = arith.constant 0 : i32
    %c0_i32_0 = arith.constant 0 : i32
    %c0_i32_1 = arith.constant 0 : i32
    return %c0_i32, %c0_i32_0 : i32, i32
  }
  func.func @transform_5(%arg0: i32) -> (i32, i32) {
    %c0_i32 = arith.constant 0 : i32
    %c0_i32_0 = arith.constant 0 : i32
    %c0_i32_1 = arith.constant 0 : i32
    return %c0_i32, %c0_i32_0 : i32, i32
  }
  func.func @transform_6(%arg0: i32) -> (i32, i32) {
    %c0_i32 = arith.constant 0 : i32
    %c0_i32_0 = arith.constant 0 : i32
    %c0_i32_1 = arith.constant 0 : i32
    return %c0_i32, %c0_i32_0 : i32, i32
  }
  func.func @transform_7(%arg0: i32) -> (i32, i32) {
    %c0_i32 = arith.constant 0 : i32
    %c0_i32_0 = arith.constant 0 : i32
    return %arg0, %c0_i32 : i32, i32
  }
}

</mosaic_0001>

<llo_original>
// kernel: bbox_head_forward.1
$region0: #{bbox_head_forward.1}
  #allocation0 [shape = 'u32[]', space=smem, size = 0x4, offset = 0x4, fixed_abs, tag = 'smem constant byte address 0x4 - core index']
  #allocation1 [shape = 'u32[144,128]{1,0:T(1,128)}', space=vmem, size = 0x12000, scoped, tag = 'internal scratch']
  %s0 = inlined_call_operand.vmem [shape: f32[16,32], index: 0, kind: input, shape index: {}]
  %s1 = inlined_call_operand.vmem [shape: f32[32,32], index: 1, kind: input, shape index: {}]
  %s2 = inlined_call_operand.vmem [shape: f32[1,32], index: 2, kind: input, shape index: {}]
  %s3 = inlined_call_operand.vmem [shape: f32[32,32], index: 3, kind: input, shape index: {}]
  %s4 = inlined_call_operand.vmem [shape: f32[1,32], index: 4, kind: input, shape index: {}]
  %s5 = inlined_call_operand.vmem [shape: f32[32,128], index: 5, kind: input, shape index: {}]
  %s6 = inlined_call_operand.vmem [shape: f32[1,128], index: 6, kind: input, shape index: {}]
  %s7 = inlined_call_operand.vmem [shape: f32[16,128], index: 7, kind: output, shape index: {}]
  %s8 = sld [smem:[#allocation0]]
  $region38: #{bbox_head_forward.1} parent=0
    _
  %s10 = ssub.s32 1, %s8
  %s11 = scalar_select 0, %s10, %s8
  // Predicated region
  $region2: #{bbox_head_forward.1} parent=0 // pred_check
    _
  $region3: #{bbox_head_forward.1} parent=0 // pred_check_branch
    %13 = sbr.rel (0) target = $region5
  $region4: #{bbox_head_forward.1} parent=0 // pred_region
    _
  $region5: #{bbox_head_forward.1} parent=0 // pred_fallthru
    _
  // Predicated region
  $region6: #{bbox_head_forward.1} parent=0 // pred_check
    _
  $region7: #{bbox_head_forward.1} parent=0 // pred_check_branch
    %15 = sbr.rel (0) target = $region9
  $region8: #{bbox_head_forward.1} parent=0 // pred_region
    _
  $region9: #{bbox_head_forward.1} parent=0 // pred_fallthru
    _
  // Predicated region
  $region10: #{bbox_head_forward.1} parent=0 // pred_check
    _
  $region11: #{bbox_head_forward.1} parent=0 // pred_check_branch
    %17 = sbr.rel (0) target = $region13
  $region12: #{bbox_head_forward.1} parent=0 // pred_region
    _
  $region13: #{bbox_head_forward.1} parent=0 // pred_fallthru
    _
  // Predicated region
  $region14: #{bbox_head_forward.1} parent=0 // pred_check
    _
  $region15: #{bbox_head_forward.1} parent=0 // pred_check_branch
    %19 = sbr.rel (0) target = $region17
  $region16: #{bbox_head_forward.1} parent=0 // pred_region
    _
  $region17: #{bbox_head_forward.1} parent=0 // pred_fallthru
    _
  // Predicated region
  $region18: #{bbox_head_forward.1} parent=0 // pred_check
    _
  $region19: #{bbox_head_forward.1} parent=0 // pred_check_branch
    %21 = sbr.rel (0) target = $region21
  $region20: #{bbox_head_forward.1} parent=0 // pred_region
    _
  $region21: #{bbox_head_forward.1} parent=0 // pred_fallthru
    _
  // Predicated region
  $region22: #{bbox_head_forward.1} parent=0 // pred_check
    _
  $region23: #{bbox_head_forward.1} parent=0 // pred_check_branch
    %23 = sbr.rel (0) target = $region25
  $region24: #{bbox_head_forward.1} parent=0 // pred_region
    _
  $region25: #{bbox_head_forward.1} parent=0 // pred_fallthru
    _
  // Predicated region
  $region26: #{bbox_head_forward.1} parent=0 // pred_check
    _
  $region27: #{bbox_head_forward.1} parent=0 // pred_check_branch
    %25 = sbr.rel (0) target = $region29
  $region28: #{bbox_head_forward.1} parent=0 // pred_region
    _
  $region29: #{bbox_head_forward.1} parent=0 // pred_fallthru
    _
  %v26 = vld [vmem:[%s0] sm:$0xff]
  %v27 = vld [vmem:[%s0 + $0x8] sm:$0xff]
  %v28 = vld [vmem:[%s1] sm:$0xff]
  %v29 = vld [vmem:[%s1 + $0x8] sm:$0xff]
  %v30 = vld [vmem:[%s1 + $0x10] sm:$0xff]
  %v31 = vld [vmem:[%s1 + $0x18] sm:$0xff]
  %v32 = vld [vmem:[%s2] sm:$0x1]
  %v34 = vlaneseq
  %v35 = vshrl.u32 %v34, 7
  %v36 = vsub.s32 0, %v35
  %v37 = vrot.slane %v32, %v36
  %vm39 = vcmask 261120
  %v41 = vsel %vm39, %v26, 0
  %v44 = vsel %vm39, %v27, 0
  %46 = vmatprep.subr.mxu0 0.0
  %47 = vmatpush1.msra.mxu0 %v28
  %48 = vmatprep.subr.mxu0 0.0
  %49 = vmatpush1.msra.mxu0 %v29
  %50 = vmatprep.subr.mxu0 0.0
  %51 = vmatpush1.msra.mxu0 %v30
  %52 = vmatprep.subr.mxu0 0.0
  %53 = vmatpush1.msra.mxu0 %v31
  %54 = vmatprep.subr.mxu0 0.0
  %55 = vmatpush1.msra.mxu0 0.0
  %56 = vmatprep.subr.mxu0 0.0
  %57 = vmatpush1.msra.mxu0 0.0
  %58 = vmatprep.subr.mxu0 0.0
  %59 = vmatpush1.msra.mxu0 0.0
  %60 = vmatprep.subr.mxu0 0.0
  %61 = vmatpush1.msra.mxu0 0.0
  %62 = vmatprep.subr.mxu0 0.0
  %63 = vmatpush1.msra.mxu0 0.0
  %64 = vmatprep.subr.mxu0 0.0
  %65 = vmatpush1.msra.mxu0 0.0
  %66 = vmatprep.subr.mxu0 0.0
  %67 = vmatpush1.msra.mxu0 0.0
  %68 = vmatprep.subr.mxu0 0.0
  %69 = vmatpush1.msra.mxu0 0.0
  %70 = vmatprep.subr.mxu0 0.0
  %71 = vmatpush1.msra.mxu0 0.0
  %72 = vmatprep.subr.mxu0 0.0
  %73 = vmatpush1.msra.mxu0 0.0
  %74 = vmatprep.subr.mxu0 0.0
  %75 = vmatpush1.msra.mxu0 0.0
  %76 = vmatprep.subr.mxu0 0.0
  %77 = vmatpush1.msra.mxu0 0.0
  %78 = vmatprep.subr.mxu0 0.0
  %79 = vmatpush1.msra.mxu0 0.0
  %80 = vmatprep.subr.mxu0 0.0
  %81 = vmatpush1.msra.mxu0 0.0
  %82 = vmatprep.subr.mxu0 0.0
  %83 = vmatpush1.msra.mxu0 0.0
  %84 = vmatprep.subr.mxu0 0.0
  %85 = vmatpush1.msra.mxu0 0.0
  %86 = vmatprep.subr.mxu0 0.0
  %87 = vmatpush1.msra.mxu0 0.0
  %88 = vmatprep.subr.mxu0 0.0
  %89 = vmatpush1.msra.mxu0 0.0
  %90 = vmatprep.subr.mxu0 0.0
  %91 = vmatpush1.msra.mxu0 0.0
  %92 = vmatprep.subr.mxu0 0.0
  %93 = vmatpush1.msra.mxu0 0.0
  %94 = vmatprep.subr.mxu0 0.0
  %95 = vmatpush1.msra.mxu0 0.0
  %96 = vmatprep.subr.mxu0 0.0
  %97 = vmatpush1.msra.mxu0 0.0
  %98 = vmatprep.subr.mxu0 0.0
  %99 = vmatpush1.msra.mxu0 0.0
  %100 = vmatprep.subr.mxu0 0.0
  %101 = vmatpush1.msra.mxu0 0.0
  %102 = vmatprep.subr.mxu0 0.0
  %103 = vmatpush1.msra.mxu0 0.0
  %104 = vmatprep.subr.mxu0 0.0
  %105 = vmatpush1.msra.mxu0 0.0
  %106 = vmatprep.subr.mxu0 0.0
  %107 = vmatpush1.msra.mxu0 0.0
  %108 = vmatprep.subr.mxu0 0.0
  %109 = vmatpush1.msra.mxu0 0.0
  %110 = vmatprep.mubr.f32.mxu0 0.0
  %111 = vmatmul.mubr.f32.gmra.mrb[0].mxu0 %v41
  %v112 = vpop.f32.mrb[0].mxu0
  %v113 = vadd.f32 %v37, %v112
  %v114 = vpop.f32.mrb[0].mxu0
  %115 = vmatprep.mubr.f32.mxu0 0.0
  %116 = vmatmul.mubr.f32.gmra.mrb[0].mxu0 %v44
  %v117 = vpop.f32.mrb[0].mxu0
  %v118 = vadd.f32 %v37, %v117
  %v119 = vpop.f32.mrb[0].mxu0
  %120 = vdwg.mxu0
  %v121 = vmax.f32 %v113, 0.0
  %v122 = vmax.f32 %v118, 0.0
  %v123 = vld [vmem:[%s3] sm:$0xff]
  %v124 = vld [vmem:[%s3 + $0x8] sm:$0xff]
  %v125 = vld [vmem:[%s3 + $0x10] sm:$0xff]
  %v126 = vld [vmem:[%s3 + $0x18] sm:$0xff]
  %v127 = vld [vmem:[%s4] sm:$0x1]
  %v129 = vlaneseq
  %v130 = vshrl.u32 %v129, 7
  %v131 = vsub.s32 0, %v130
  %v132 = vrot.slane %v127, %v131
  %v135 = vsel %vm39, %v121, 0
  %v138 = vsel %vm39, %v122, 0
  %140 = vmatprep.subr.mxu0 0.0
  %141 = vmatpush1.msra.mxu0 %v123
  %142 = vmatprep.subr.mxu0 0.0
  %143 = vmatpush1.msra.mxu0 %v124
  %144 = vmatprep.subr.mxu0 0.0
  %145 = vmatpush1.msra.mxu0 %v125
  %146 = vmatprep.subr.mxu0 0.0
  %147 = vmatpush1.msra.mxu0 %v126
  %148 = vmatprep.subr.mxu0 0.0
  %149 = vmatpush1.msra.mxu0 0.0
  %150 = vmatprep.subr.mxu0 0.0
  %151 = vmatpush1.msra.mxu0 0.0
  %152 = vmatprep.subr.mxu0 0.0
  %153 = vmatpush1.msra.mxu0 0.0
  %154 = vmatprep.subr.mxu0 0.0
  %155 = vmatpush1.msra.mxu0 0.0
  %156 = vmatprep.subr.mxu0 0.0
  %157 = vmatpush1.msra.mxu0 0.0
  %158 = vmatprep.subr.mxu0 0.0
  %159 = vmatpush1.msra.mxu0 0.0
  %160 = vmatprep.subr.mxu0 0.0
  %161 = vmatpush1.msra.mxu0 0.0
  %162 = vmatprep.subr.mxu0 0.0
  %163 = vmatpush1.msra.mxu0 0.0
  %164 = vmatprep.subr.mxu0 0.0
  %165 = vmatpush1.msra.mxu0 0.0
  %166 = vmatprep.subr.mxu0 0.0
  %167 = vmatpush1.msra.mxu0 0.0
  %168 = vmatprep.subr.mxu0 0.0
  %169 = vmatpush1.msra.mxu0 0.0
  %170 = vmatprep.subr.mxu0 0.0
  %171 = vmatpush1.msra.mxu0 0.0
  %172 = vmatprep.subr.mxu0 0.0
  %173 = vmatpush1.msra.mxu0 0.0
  %174 = vmatprep.subr.mxu0 0.0
  %175 = vmatpush1.msra.mxu0 0.0
  %176 = vmatprep.subr.mxu0 0.0
  %177 = vmatpush1.msra.mxu0 0.0
  %178 = vmatprep.subr.mxu0 0.0
  %179 = vmatpush1.msra.mxu0 0.0
  %180 = vmatprep.subr.mxu0 0.0
  %181 = vmatpush1.msra.mxu0 0.0
  %182 = vmatprep.subr.mxu0 0.0
  %183 = vmatpush1.msra.mxu0 0.0
  %184 = vmatprep.subr.mxu0 0.0
  %185 = vmatpush1.msra.mxu0 0.0
  %186 = vmatprep.subr.mxu0 0.0
  %187 = vmatpush1.msra.mxu0 0.0
  %188 = vmatprep.subr.mxu0 0.0
  %189 = vmatpush1.msra.mxu0 0.0
  %190 = vmatprep.subr.mxu0 0.0
  %191 = vmatpush1.msra.mxu0 0.0
  %192 = vmatprep.subr.mxu0 0.0
  %193 = vmatpush1.msra.mxu0 0.0
  %194 = vmatprep.subr.mxu0 0.0
  %195 = vmatpush1.msra.mxu0 0.0
  %196 = vmatprep.subr.mxu0 0.0
  %197 = vmatpush1.msra.mxu0 0.0
  %198 = vmatprep.subr.mxu0 0.0
  %199 = vmatpush1.msra.mxu0 0.0
  %200 = vmatprep.subr.mxu0 0.0
  %201 = vmatpush1.msra.mxu0 0.0
  %202 = vmatprep.subr.mxu0 0.0
  %203 = vmatpush1.msra.mxu0 0.0
  %204 = vmatprep.mubr.f32.mxu0 0.0
  %205 = vmatmul.mubr.f32.gmra.mrb[0].mxu0 %v135
  %v206 = vpop.f32.mrb[0].mxu0
  %v207 = vadd.f32 %v132, %v206
  %v208 = vpop.f32.mrb[0].mxu0
  %209 = vmatprep.mubr.f32.mxu0 0.0
  %210 = vmatmul.mubr.f32.gmra.mrb[0].mxu0 %v138
  %v211 = vpop.f32.mrb[0].mxu0
  %v212 = vadd.f32 %v132, %v211
  %v213 = vpop.f32.mrb[0].mxu0
  %214 = vdwg.mxu0
  %v215 = vmax.f32 %v207, 0.0
  %v216 = vmax.f32 %v212, 0.0
  %v217 = vld [vmem:[%s5] sm:$0xff]
  %v218 = vld [vmem:[%s5 + $0x8] sm:$0xff]
  %v219 = vld [vmem:[%s5 + $0x10] sm:$0xff]
  %v220 = vld [vmem:[%s5 + $0x18] sm:$0xff]
  %v221 = vld [vmem:[%s6] sm:$0x1]
  %v223 = vlaneseq
  %v224 = vshrl.u32 %v223, 7
  %v225 = vsub.s32 0, %v224
  %v226 = vrot.slane %v221, %v225
  %v229 = vsel %vm39, %v215, 0
  %v232 = vsel %vm39, %v216, 0
  %234 = vmatprep.subr.mxu0 0.0
  %235 = vmatpush1.msra.mxu0 %v217
  %236 = vmatprep.subr.mxu0 0.0
  %237 = vmatpush1.msra.mxu0 %v218
  %238 = vmatprep.subr.mxu0 0.0
  %239 = vmatpush1.msra.mxu0 %v219
  %240 = vmatprep.subr.mxu0 0.0
  %241 = vmatpush1.msra.mxu0 %v220
  %242 = vmatprep.subr.mxu0 0.0
  %243 = vmatpush1.msra.mxu0 0.0
  %244 = vmatprep.subr.mxu0 0.0
  %245 = vmatpush1.msra.mxu0 0.0
  %246 = vmatprep.subr.mxu0 0.0
  %247 = vmatpush1.msra.mxu0 0.0
  %248 = vmatprep.subr.mxu0 0.0
  %249 = vmatpush1.msra.mxu0 0.0
  %250 = vmatprep.subr.mxu0 0.0
  %251 = vmatpush1.msra.mxu0 0.0
  %252 = vmatprep.subr.mxu0 0.0
  %253 = vmatpush1.msra.mxu0 0.0
  %254 = vmatprep.subr.mxu0 0.0
  %255 = vmatpush1.msra.mxu0 0.0
  %256 = vmatprep.subr.mxu0 0.0
  %257 = vmatpush1.msra.mxu0 0.0
  %258 = vmatprep.subr.mxu0 0.0
  %259 = vmatpush1.msra.mxu0 0.0
  %260 = vmatprep.subr.mxu0 0.0
  %261 = vmatpush1.msra.mxu0 0.0
  %262 = vmatprep.subr.mxu0 0.0
  %263 = vmatpush1.msra.mxu0 0.0
  %264 = vmatprep.subr.mxu0 0.0
  %265 = vmatpush1.msra.mxu0 0.0
  %266 = vmatprep.subr.mxu0 0.0
  %267 = vmatpush1.msra.mxu0 0.0
  %268 = vmatprep.subr.mxu0 0.0
  %269 = vmatpush1.msra.mxu0 0.0
  %270 = vmatprep.subr.mxu0 0.0
  %271 = vmatpush1.msra.mxu0 0.0
  %272 = vmatprep.subr.mxu0 0.0
  %273 = vmatpush1.msra.mxu0 0.0
  %274 = vmatprep.subr.mxu0 0.0
  %275 = vmatpush1.msra.mxu0 0.0
  %276 = vmatprep.subr.mxu0 0.0
  %277 = vmatpush1.msra.mxu0 0.0
  %278 = vmatprep.subr.mxu0 0.0
  %279 = vmatpush1.msra.mxu0 0.0
  %280 = vmatprep.subr.mxu0 0.0
  %281 = vmatpush1.msra.mxu0 0.0
  %282 = vmatprep.subr.mxu0 0.0
  %283 = vmatpush1.msra.mxu0 0.0
  %284 = vmatprep.subr.mxu0 0.0
  %285 = vmatpush1.msra.mxu0 0.0
  %286 = vmatprep.subr.mxu0 0.0
  %287 = vmatpush1.msra.mxu0 0.0
  %288 = vmatprep.subr.mxu0 0.0
  %289 = vmatpush1.msra.mxu0 0.0
  %290 = vmatprep.subr.mxu0 0.0
  %291 = vmatpush1.msra.mxu0 0.0
  %292 = vmatprep.subr.mxu0 0.0
  %293 = vmatpush1.msra.mxu0 0.0
  %294 = vmatprep.subr.mxu0 0.0
  %295 = vmatpush1.msra.mxu0 0.0
  %296 = vmatprep.subr.mxu0 0.0
  %297 = vmatpush1.msra.mxu0 0.0
  %298 = vmatprep.mubr.f32.mxu0 0.0
  %299 = vmatmul.mubr.f32.gmra.mrb[0].mxu0 %v229
  %v300 = vpop.f32.mrb[0].mxu0
  %v301 = vadd.f32 %v226, %v300
  %v302 = vpop.f32.mrb[0].mxu0
  %303 = vmatprep.mubr.f32.mxu0 0.0
  %304 = vmatmul.mubr.f32.gmra.mrb[0].mxu0 %v232
  %v305 = vpop.f32.mrb[0].mxu0
  %v306 = vadd.f32 %v226, %v305
  %v307 = vpop.f32.mrb[0].mxu0
  %308 = vdwg.mxu0
  %309 = vst [vmem:[%s7] sm:$0xff] %v301
  %310 = vst [vmem:[%s7 + $0x8] sm:$0xff] %v306
  // Predicated region
  $region30: #{bbox_head_forward.1} parent=0 // pred_check
    _
  $region31: #{bbox_head_forward.1} parent=0 // pred_check_branch
    %312 = sbr.rel (0) target = $region33
  $region32: #{bbox_head_forward.1} parent=0 // pred_region
    _
  $region33: #{bbox_head_forward.1} parent=0 // pred_fallthru
    _
  // Predicated region
  $region34: #{bbox_head_forward.1} parent=0 // pred_check
    _
  $region35: #{bbox_head_forward.1} parent=0 // pred_check_branch
    %314 = sbr.rel (0) target = $region37
  $region36: #{bbox_head_forward.1} parent=0 // pred_region
    _
  $region37: #{bbox_head_forward.1} parent=0 // pred_fallthru
    _

</llo_original>
